<compile_context>
chip_gen: v7x
topology: tpu7x:2x2x1
jax: 0.10.0
libtpu: 0.0.40
codegen_flags: <defaults>
</compile_context>

<pallas_src>
import jax
import jax.numpy as jnp
from jax.experimental import pallas as pl
from jax.experimental.pallas import tpu as pltpu


# Vocab-size threshold below which the one-hot MXU gather is used.
_ONEHOT_MAX_VOCAB = 2048


def _embed_onehot_kernel(idx_ref, tab_ref, out_ref):
    """Gather T table rows via a one-hot (T,V) x (V,D) MXU matmul."""
    # idx_ref: (T, 1) int32 token ids (VMEM)
    # tab_ref: (V, D) embedding table, resident in VMEM (constant index_map)
    # out_ref: (T, D) output slab
    n_tok = out_ref.shape[0]
    vocab = tab_ref.shape[0]
    ids = idx_ref[...]                                             # (T, 1)
    col = jax.lax.broadcasted_iota(jnp.int32, (n_tok, vocab), 1)   # (T, V)
    onehot = (ids == col).astype(tab_ref.dtype)                    # (T, V)
    out_ref[...] = jnp.dot(
        onehot, tab_ref[...], preferred_element_type=jnp.float32
    ).astype(out_ref.dtype)


def _embed_loop_kernel(idx_ref, tab_ref, out_ref):
    """Gather T table rows with per-token dynamic slices (large vocab path)."""
    # idx_ref: (T,) int32 token ids in SMEM (cheap scalar reads)
    # tab_ref: (V, D) embedding table, resident in VMEM
    # out_ref: (T, D) output slab
    n_tok = out_ref.shape[0]

    def body(t, carry):
        tok = idx_ref[t]
        out_ref[pl.ds(t, 1), :] = tab_ref[pl.ds(tok, 1), :]
        return carry

    jax.lax.fori_loop(0, n_tok, body, 0)


def word_embedding_forward(idx_texts: jax.Array, table: jax.Array,
                           *, block_tokens: int = 256) -> jax.Array:
    """Equivalent of MyWordEmbedding.forward: table[idx_texts]."""
    V, D = table.shape
    in_shape = idx_texts.shape

    idx_flat = idx_texts.reshape(-1).astype(jnp.int32)
    # nn.Embedding treats OOB ids as undefined behaviour; clamp so the
    # in-kernel gather never reads outside the table.
    idx_flat = jnp.clip(idx_flat, 0, V - 1)
    N = idx_flat.shape[0]

    # Tokens per grid step: sublane-dense (multiple of 8) and large enough to
    # amortize per-grid-step pipeline overhead.
    if N >= block_tokens:
        T = block_tokens
    else:
        T = max(8, ((N + 7) // 8) * 8)
    n_pad = pl.cdiv(N, T) * T
    if n_pad != N:
        idx_flat = jnp.pad(idx_flat, (0, n_pad - N))   # pad with id 0 (valid)
    grid = (n_pad // T,)

    use_onehot = V <= _ONEHOT_MAX_VOCAB

    # TODO(synk): tables that do not fit in VMEM (> ~25-30 MB on v7x, ~100 MB
    # on v5e/v6e) need a manually double-buffered per-row HBM DMA gather
    # (memory_space=pl.ANY + pltpu.make_async_copy); not implemented here.

    table_spec = pl.BlockSpec((V, D), lambda i: (0, 0))   # resident: DMA'd once
    out_spec = pl.BlockSpec((T, D), lambda i: (i, 0))     # dense (T, D) slab

    if use_onehot:
        kernel = _embed_onehot_kernel
        idx_in = idx_flat.reshape(n_pad, 1)
        idx_spec = pl.BlockSpec((T, 1), lambda i: (i, 0))
    else:
        kernel = _embed_loop_kernel
        idx_in = idx_flat
        idx_spec = pl.BlockSpec((T,), lambda i: (i,),
                                memory_space=pltpu.MemorySpace.SMEM)

    itemsize = jnp.dtype(table.dtype).itemsize
    vmem_need = (2 * V * D * itemsize          # table (allow double buffering)
                 + 2 * T * D * itemsize        # double-buffered output slab
                 + 2 * T * 4                   # idx block
                 + (4 << 20))                  # headroom
    vmem_limit = int(min(max(vmem_need, 32 << 20), 128 << 20))

    grid_spec = pltpu.PrefetchScalarGridSpec(
        num_scalar_prefetch=0,
        grid=grid,
        in_specs=[idx_spec, table_spec],
        out_specs=out_spec,
    )

    out_flat = pl.pallas_call(
        kernel,
        out_shape=jax.ShapeDtypeStruct((n_pad, D), table.dtype),
        grid_spec=grid_spec,
        compiler_params=pltpu.CompilerParams(
            dimension_semantics=("parallel",),   # independent token blocks
            vmem_limit_bytes=vmem_limit,
        ),
    )(idx_in, table)

    return out_flat[:N].reshape(*in_shape, D)


if __name__ == "__main__":
    # Small shapes consistent with the module's forward:
    #   idx_texts: (batch=2, seq=8) int32 token ids
    #   embedding table: (num_embeddings=64, embedding_dim=128)
    key = jax.random.PRNGKey(0)
    k_tab, k_idx = jax.random.split(key)

    num_embeddings = 64
    embedding_dim = 128  # small stand-in for the default 300
    batch, seq = 2, 8

    # nn.Embedding weight init ~ N(0, 1), deterministic via PRNGKey(0).
    table = jax.random.normal(k_tab, (num_embeddings, embedding_dim),
                              dtype=jnp.float32)
    idx_texts = jax.random.randint(k_idx, (batch, seq), 0, num_embeddings,
                                   dtype=jnp.int32)

    out = word_embedding_forward(idx_texts, table)
    out = jax.block_until_ready(out)

    # Reference check against plain JAX gather (one-hot gather is exact).
    ref = table[idx_texts]
    assert out.shape == (batch, seq, embedding_dim)
    assert out.dtype == table.dtype
    assert jnp.allclose(out, ref), "Pallas embedding mismatch vs reference gather"

    print("KERNEL_OK")
</pallas_src>

<mosaic_0001>
module attributes {stable_mosaic.version = 11 : i64} {
  func.func @_embed_onehot_kernel(%arg0: i32, %arg1: memref<16x1xi32, #tpu.memory_space<vmem>>, %arg2: memref<64x128xf32, #tpu.memory_space<vmem>>, %arg3: memref<16x128xf32, #tpu.memory_space<vmem>>) attributes {dimension_semantics = [#tpu.dimension_semantics<parallel>], iteration_bounds = array<i64: 1>, scalar_prefetch = 0 : i64, scratch_operands = 0 : i64, tpu.core_type = #tpu.core_type<tc>, window_params = [{transform_indices = @transform_0, window_bounds = array<i64: 16, 1>}, {pipeline_mode = #tpu.pipeline_mode<synchronous>, transform_indices = @transform_1, window_bounds = array<i64: 64, 128>}, {transform_indices = @transform_2, window_bounds = array<i64: 16, 128>}]} {
    %c0 = arith.constant 0 : index
    %c0_0 = arith.constant 0 : index
    %0 = vector.load %arg1[%c0, %c0_0] : memref<16x1xi32, #tpu.memory_space<vmem>>, vector<16x1xi32>
    %1 = tpu.iota {dimensions = array<i32: 1>} : vector<16x64xi32>
    %2 = vector.broadcast %0 : vector<16x1xi32> to vector<16x64xi32>
    %3 = arith.cmpi eq, %2, %1 : vector<16x64xi32>
    %4 = arith.extui %3 : vector<16x64xi1> to vector<16x64xi32>
    %5 = arith.sitofp %4 : vector<16x64xi32> to vector<16x64xf32>
    %c0_1 = arith.constant 0 : index
    %c0_2 = arith.constant 0 : index
    %6 = vector.load %arg2[%c0_1, %c0_2] : memref<64x128xf32, #tpu.memory_space<vmem>>, vector<64x128xf32>
    %cst = arith.constant dense<0.000000e+00> : vector<16x128xf32>
    %7 = tpu.matmul %5, %6, %cst {dimension_numbers = #tpu.dot_dimension_numbers<[1], [0], [0], [1], [0, 0, 1, 1], [], []>} : vector<16x64xf32>, vector<64x128xf32>, vector<16x128xf32> -> vector<16x128xf32>
    %c0_3 = arith.constant 0 : index
    %c0_4 = arith.constant 0 : index
    %8 = vector.load %arg3[%c0_3, %c0_4] : memref<16x128xf32, #tpu.memory_space<vmem>>, vector<16x128xf32>
    tpu.vector_store %arg3[%c0_3, %c0_4], %7 {strides = array<i32>} : memref<16x128xf32, #tpu.memory_space<vmem>>, vector<16x128xf32>,
    return
  }
  func.func @transform_0(%arg0: i32) -> (i32, i32) {
    %c0_i32 = arith.constant 0 : i32
    %c0_i32_0 = arith.constant 0 : i32
    return %arg0, %c0_i32 : i32, i32
  }
  func.func @transform_1(%arg0: i32) -> (i32, i32) {
    %c0_i32 = arith.constant 0 : i32
    %c0_i32_0 = arith.constant 0 : i32
    %c0_i32_1 = arith.constant 0 : i32
    return %c0_i32, %c0_i32_0 : i32, i32
  }
  func.func @transform_2(%arg0: i32) -> (i32, i32) {
    %c0_i32 = arith.constant 0 : i32
    %c0_i32_0 = arith.constant 0 : i32
    return %arg0, %c0_i32 : i32, i32
  }
}

</mosaic_0001>

<llo_original>
// kernel: tpu_custom_call.1
$region0: #{tpu_custom_call.1}
  #allocation0 [shape = 'u32[]', space=smem, size = 0x4, offset = 0x4, fixed_abs, tag = 'smem constant byte address 0x4 - core index']
  #allocation1 [shape = 'u32[144,128]{1,0:T(1,128)}', space=vmem, size = 0x12000, scoped, tag = 'internal scratch']
  %s0 = inlined_call_operand.vmem [shape: s32[16,1], index: 0, kind: input, shape index: {}]
  %s1 = inlined_call_operand.hbm [shape: f32[64,128], index: 1, kind: input, shape index: {}]
  %s2 = inlined_call_operand.hbm [shape: f32[16,128], index: 2, kind: output, shape index: {}]
  %s3 = sld [smem:[#allocation0]]
  $region22: #{tpu_custom_call.1} parent=0
    _
  %s5 = ssub.s32 1, %s3
  %s6 = scalar_select 0, %s5, %s3
  $region1: #{tpu_custom_call.1} parent=0
    #allocation2 [shape = 'u8[32768]{0}', space=vmem, size = 0x8000, scoped, tag = 'input window, operand 1, single buffered']
    #allocation3 [shape = 's32[1]{0}', space=sflag, size = 0x4, scoped, tag = 'scoped memory for tpu_custom_call.1']
    #allocation4 [shape = 's32[1]{0}', space=sflag, size = 0x4, scoped, tag = 'scoped memory for tpu_custom_call.1']
    #allocation5 [shape = 'u8[8192]{0}', space=vmem, size = 0x2000, scoped, tag = 'output window, operand 0, single buffered']
    %7 = vsyncpa [#allocation3], 0
    %8 = vsyncpa [#allocation4], 0
    // Predicated region
    $region2: #{tpu_custom_call.1} parent=1 // pred_check
      _
    $region3: #{tpu_custom_call.1} parent=1 // pred_check_branch
      %10 = sbr.rel (0) target = $region5
    $region4: #{tpu_custom_call.1} parent=1 // pred_region
      _
    $region5: #{tpu_custom_call.1} parent=1 // pred_fallthru
      _
    // Predicated region
    $region6: #{tpu_custom_call.1} parent=1 // pred_check
      _
    $region7: #{tpu_custom_call.1} parent=1 // pred_check_branch
      %12 = sbr.rel (0) target = $region9
    $region8: #{tpu_custom_call.1} parent=1 // pred_region
      %s14 = ssub.s32 1024, 1024
      %15 = vsyncadd [#allocation3], %s14
      %s16 = sshll.u32 [#allocation2], 4
      %s17 = int_to_ptr.vmem [resolvable:$true] %s16
      %22 = dma.hbm_to_vmem [thread:$0]  %s1, 1024, %s17, [#allocation3], 128, 128, 8
    $region9: #{tpu_custom_call.1} parent=1 // pred_fallthru
      _
    // Predicated region
    $region10: #{tpu_custom_call.1} parent=1 // pred_check
      _
    $region11: #{tpu_custom_call.1} parent=1 // pred_check_branch
      %24 = sbr.rel (0) target = $region13
    $region12: #{tpu_custom_call.1} parent=1 // pred_region
      %25 = dma.done [#allocation3], 1024
    $region13: #{tpu_custom_call.1} parent=1 // pred_fallthru
      _
    %v26 = vld [vmem:[%s0] sm:$0xff]
    %v27 = vld [vmem:[%s0 + $0x8] sm:$0xff]
    %v28 = vlaneseq
    %v29 = vand.u32 %v28, 127
    %30 = vset.pattern.permute.xlu0 0
    %31 = vperm.xlu0 %30, %v26
    %v32 = vpop.permute.xlu0 %31
    %33 = vset.pattern.permute.xlu0 0
    %34 = vperm.xlu0 %33, %v27
    %v35 = vpop.permute.xlu0 %34
    %vm36 = vcmp.eq.s32.totalorder %v32, %v29
    %vm37 = vcmp.eq.s32.totalorder %v35, %v29
    %v38 = vsel %vm36, 1, 0
    %v39 = vsel %vm37, 1, 0
    %v40 = vcvt.s32.f32 %v38
    %v41 = vcvt.s32.f32 %v39
    %v42 = vld [vmem:[#allocation2] sm:$0xff]
    %v43 = vld [vmem:[#allocation2 + $0x8] sm:$0xff]
    %v44 = vld [vmem:[#allocation2 + $0x10] sm:$0xff]
    %v45 = vld [vmem:[#allocation2 + $0x18] sm:$0xff]
    %v46 = vld [vmem:[#allocation2 + $0x20] sm:$0xff]
    %v47 = vld [vmem:[#allocation2 + $0x28] sm:$0xff]
    %v48 = vld [vmem:[#allocation2 + $0x30] sm:$0xff]
    %v49 = vld [vmem:[#allocation2 + $0x38] sm:$0xff]
    %vm50 = vcmask 523264
    %v52 = vsel %vm50, %v40, 0
    %v55 = vsel %vm50, %v41, 0
    %57 = vmatprep.subr.mxu0 0.0
    %58 = vmatpush1.msra.mxu0 %v42
    %59 = vmatprep.subr.mxu0 0.0
    %60 = vmatpush1.msra.mxu0 %v43
    %61 = vmatprep.subr.mxu0 0.0
    %62 = vmatpush1.msra.mxu0 %v44
    %63 = vmatprep.subr.mxu0 0.0
    %64 = vmatpush1.msra.mxu0 %v45
    %65 = vmatprep.subr.mxu0 0.0
    %66 = vmatpush1.msra.mxu0 %v46
    %67 = vmatprep.subr.mxu0 0.0
    %68 = vmatpush1.msra.mxu0 %v47
    %69 = vmatprep.subr.mxu0 0.0
    %70 = vmatpush1.msra.mxu0 %v48
    %71 = vmatprep.subr.mxu0 0.0
    %72 = vmatpush1.msra.mxu0 %v49
    %73 = vmatprep.subr.mxu0 0.0
    %74 = vmatpush1.msra.mxu0 0.0
    %75 = vmatprep.subr.mxu0 0.0
    %76 = vmatpush1.msra.mxu0 0.0
    %77 = vmatprep.subr.mxu0 0.0
    %78 = vmatpush1.msra.mxu0 0.0
    %79 = vmatprep.subr.mxu0 0.0
    %80 = vmatpush1.msra.mxu0 0.0
    %81 = vmatprep.subr.mxu0 0.0
    %82 = vmatpush1.msra.mxu0 0.0
    %83 = vmatprep.subr.mxu0 0.0
    %84 = vmatpush1.msra.mxu0 0.0
    %85 = vmatprep.subr.mxu0 0.0
    %86 = vmatpush1.msra.mxu0 0.0
    %87 = vmatprep.subr.mxu0 0.0
    %88 = vmatpush1.msra.mxu0 0.0
    %89 = vmatprep.subr.mxu0 0.0
    %90 = vmatpush1.msra.mxu0 0.0
    %91 = vmatprep.subr.mxu0 0.0
    %92 = vmatpush1.msra.mxu0 0.0
    %93 = vmatprep.subr.mxu0 0.0
    %94 = vmatpush1.msra.mxu0 0.0
    %95 = vmatprep.subr.mxu0 0.0
    %96 = vmatpush1.msra.mxu0 0.0
    %97 = vmatprep.subr.mxu0 0.0
    %98 = vmatpush1.msra.mxu0 0.0
    %99 = vmatprep.subr.mxu0 0.0
    %100 = vmatpush1.msra.mxu0 0.0
    %101 = vmatprep.subr.mxu0 0.0
    %102 = vmatpush1.msra.mxu0 0.0
    %103 = vmatprep.subr.mxu0 0.0
    %104 = vmatpush1.msra.mxu0 0.0
    %105 = vmatprep.subr.mxu0 0.0
    %106 = vmatpush1.msra.mxu0 0.0
    %107 = vmatprep.subr.mxu0 0.0
    %108 = vmatpush1.msra.mxu0 0.0
    %109 = vmatprep.subr.mxu0 0.0
    %110 = vmatpush1.msra.mxu0 0.0
    %111 = vmatprep.subr.mxu0 0.0
    %112 = vmatpush1.msra.mxu0 0.0
    %113 = vmatprep.subr.mxu0 0.0
    %114 = vmatpush1.msra.mxu0 0.0
    %115 = vmatprep.subr.mxu0 0.0
    %116 = vmatpush1.msra.mxu0 0.0
    %117 = vmatprep.subr.mxu0 0.0
    %118 = vmatpush1.msra.mxu0 0.0
    %119 = vmatprep.subr.mxu0 0.0
    %120 = vmatpush1.msra.mxu0 0.0
    %121 = vmatprep.mubr.f32.mxu0 0.0
    %122 = vmatmul.mubr.f32.gmra.mrb[0].mxu0 %v52
    %v123 = vpop.f32.mrb[0].mxu0
    %v124 = vadd.f32 0.0, %v123
    %v125 = vpop.f32.mrb[0].mxu0
    %126 = vmatprep.mubr.f32.mxu0 0.0
    %127 = vmatmul.mubr.f32.gmra.mrb[0].mxu0 %v55
    %v128 = vpop.f32.mrb[0].mxu0
    %v129 = vadd.f32 0.0, %v128
    %v130 = vpop.f32.mrb[0].mxu0
    %131 = vdwg.mxu0
    %132 = vst [vmem:[#allocation5] sm:$0xff] %v124
    %133 = vst [vmem:[#allocation5 + $0x8] sm:$0xff] %v129
    // Predicated region
    $region14: #{tpu_custom_call.1} parent=1 // pred_check
      _
    $region15: #{tpu_custom_call.1} parent=1 // pred_check_branch
      %135 = sbr.rel (0) target = $region17
    $region16: #{tpu_custom_call.1} parent=1 // pred_region
      %s137 = ssub.s32 256, 256
      %138 = vsyncadd [#allocation4], %s137
      %s139 = sshll.u32 [#allocation5], 4
      %s140 = int_to_ptr.vmem [resolvable:$true] %s139
      %145 = dma.vmem_to_hbm [thread:$0]  %s140, 256, %s2, [#allocation4], 128, 128, 8
    $region17: #{tpu_custom_call.1} parent=1 // pred_fallthru
      _
    // Predicated region
    $region18: #{tpu_custom_call.1} parent=1 // pred_check
      _
    $region19: #{tpu_custom_call.1} parent=1 // pred_check_branch
      %147 = sbr.rel (0) target = $region21
    $region20: #{tpu_custom_call.1} parent=1 // pred_region
      %148 = dma.done [#allocation4], 256
    $region21: #{tpu_custom_call.1} parent=1 // pred_fallthru
      _
    %149 = vsyncpa [#allocation3], 1
    %150 = vsyncpa [#allocation4], 1

</llo_original>
